<compile_context>
chip_gen: v6e
topology: v6e:2x2x1
jax: 0.10.0
libtpu: 0.0.40
codegen_flags: <defaults>
</compile_context>

<pallas_src>
import functools

import jax
import jax.numpy as jnp
from jax.experimental import pallas as pl
from jax.experimental.pallas import tpu as pltpu


def rnn_linear_kernel(x_ref, wih_ref, whh_ref, b_ref, wlin_ref, blin_ref,
                      y_ref, out_ref, *, seq_len, batch_p):
    # Shapes (all 2D, already padded/flattened by the wrapper):
    #   x_ref    (S*Bp, I)      wih_ref (I, H)    whh_ref (H, H)
    #   b_ref    (1, H)         wlin_ref (H, O)   blin_ref (1, O)
    #   y_ref    (S*Bp, O)      out_ref (S*Bp, H)
    S, Bp = seq_len, batch_p
    H = whh_ref.shape[0]

    # ---- Hoisted input projection: one (S*Bp, I) @ (I, H) MXU matmul for all
    # timesteps.  pre_x[t*Bp:(t+1)*Bp] = x[t] @ W_ih^T + (b_ih + b_hh).
    pre_x = (jnp.dot(x_ref[...], wih_ref[...],
                     preferred_element_type=jnp.float32)
             + b_ref[...])                                   # (S*Bp, H)

    whh = whh_ref[...]        # load once; lives in vregs across the recurrence

    # ---- Serial recurrence, fully unrolled (S static & small).  Only
    # h @ W_hh^T + relu remains on the serial critical path; h_t are kept in
    # vregs (~1 vreg per step here), no per-step VMEM stores.
    h = jnp.zeros((Bp, H), jnp.float32)
    hs = []
    for t in range(S):
        pre_t = pre_x[t * Bp:(t + 1) * Bp, :]          # static sublane-group slice
        h = jnp.maximum(
            pre_t + jnp.dot(h, whh, preferred_element_type=jnp.float32),
            0.0)
        hs.append(h)

    out_all = jnp.concatenate(hs, axis=0)              # (S*Bp, H), still in vregs

    # ---- Single full-slab writes + hoisted output projection fed directly
    # from vregs (no out_ref re-read).
    out_ref[...] = out_all
    y_ref[...] = (jnp.dot(out_all, wlin_ref[...],
                          preferred_element_type=jnp.float32)
                  + blin_ref[...])


def rnn_linear(x, w_ih, w_hh, b_ih, b_hh, w_lin, b_lin):
    """x: (S, B, I). Weights follow PyTorch conventions:
       w_ih (H, I), w_hh (H, H), b_ih (H,), b_hh (H,), w_lin (O, H), b_lin (O,)."""
    S, B, I = x.shape
    H = w_ih.shape[0]
    O = w_lin.shape[0]

    # Pad batch to a sublane multiple (8) so every (Bp, H) state tile occupies
    # whole sublanes.  (At production batch sizes, pad/tile toward the MXU row
    # count -- 128 v5e / 256 v6e+ -- and add a "parallel" batch grid axis.)
    Bp = max(8, ((B + 7) // 8) * 8)
    x_pad = x.astype(jnp.float32)
    if Bp != B:
        x_pad = jnp.pad(x_pad, ((0, 0), (0, Bp - B), (0, 0)))
    x_flat = x_pad.reshape(S * Bp, I)                  # wrapper-side reshape: free

    # Pre-transpose so the kernel does plain row-major matmuls on the MXU.
    wih_t = w_ih.T.astype(jnp.float32)                    # (I, H)
    whh_t = w_hh.T.astype(jnp.float32)                    # (H, H)
    b = (b_ih + b_hh).reshape(1, H).astype(jnp.float32)   # combined RNN bias
    wlin_t = w_lin.T.astype(jnp.float32)                  # (H, O)
    blin = b_lin.reshape(1, O).astype(jnp.float32)        # (1, O)

    vmem_spec = pl.BlockSpec(memory_space=pltpu.MemorySpace.VMEM)
    flops = 2 * S * Bp * (I * H + H * H + H * O)
    bytes_accessed = 4 * (S * Bp * (I + 2 * H + O) + I * H + H * H + H * O + H + O)

    # Single gridless invocation: all operands/outputs fully resident in VMEM.
    y_flat, out_flat = pl.pallas_call(
        functools.partial(rnn_linear_kernel, seq_len=S, batch_p=Bp),
        out_shape=(
            jax.ShapeDtypeStruct((S * Bp, O), jnp.float32),
            jax.ShapeDtypeStruct((S * Bp, H), jnp.float32),
        ),
        in_specs=[vmem_spec] * 6,
        out_specs=(vmem_spec, vmem_spec),
        cost_estimate=pl.CostEstimate(flops=flops, transcendentals=0,
                                      bytes_accessed=bytes_accessed),
    )(x_flat, wih_t, whh_t, b, wlin_t, blin)

    y = y_flat.reshape(S, Bp, O)
    out = out_flat.reshape(S, Bp, H)
    if Bp != B:
        y = y[:, :B]
        out = out[:, :B]
    return y, out


def reference(x, w_ih, w_hh, b_ih, b_hh, w_lin, b_lin):
    """Pure-JAX reference matching PyTorch nn.RNN(relu) + nn.Linear."""
    S, B, I = x.shape
    H = w_ih.shape[0]

    def step(h, x_t):
        h_new = jnp.maximum(x_t @ w_ih.T + b_ih + h @ w_hh.T + b_hh, 0.0)
        return h_new, h_new

    h0 = jnp.zeros((B, H), jnp.float32)
    _, out = jax.lax.scan(step, h0, x)
    y = out @ w_lin.T + b_lin
    return y, out


if __name__ == "__main__":
    S, B = 8, 4               # seq_len, batch
    I, H, O = 16, 32, 8       # input_size, hidden_size, output_size

    key = jax.random.PRNGKey(0)
    kx, k1, k2, k3, k4, k5, k6 = jax.random.split(key, 7)

    # Deterministic PyTorch-style init: uniform(-1/sqrt(H), 1/sqrt(H))
    s = 1.0 / jnp.sqrt(jnp.float32(H))
    x = jax.random.normal(kx, (S, B, I), jnp.float32)
    w_ih = jax.random.uniform(k1, (H, I), jnp.float32, -s, s)
    w_hh = jax.random.uniform(k2, (H, H), jnp.float32, -s, s)
    b_ih = jax.random.uniform(k3, (H,), jnp.float32, -s, s)
    b_hh = jax.random.uniform(k4, (H,), jnp.float32, -s, s)
    w_lin = jax.random.uniform(k5, (O, H), jnp.float32, -s, s)
    b_lin = jax.random.uniform(k6, (O,), jnp.float32, -s, s)

    y, out = rnn_linear(x, w_ih, w_hh, b_ih, b_hh, w_lin, b_lin)
    jax.block_until_ready((y, out))

    y_ref, out_ref = reference(x, w_ih, w_hh, b_ih, b_hh, w_lin, b_lin)
    assert y.shape == y_ref.shape and out.shape == out_ref.shape
    assert jnp.allclose(y, y_ref, atol=1e-5, rtol=1e-5)
    assert jnp.allclose(out, out_ref, atol=1e-5, rtol=1e-5)

    print("KERNEL_OK")
</pallas_src>

<mosaic_0001>
module attributes {stable_mosaic.version = 11 : i64} {
  func.func @rnn_linear_kernel(%arg0: memref<64x16xf32, #tpu.memory_space<vmem>>, %arg1: memref<16x32xf32, #tpu.memory_space<vmem>>, %arg2: memref<32x32xf32, #tpu.memory_space<vmem>>, %arg3: memref<1x32xf32, #tpu.memory_space<vmem>>, %arg4: memref<32x8xf32, #tpu.memory_space<vmem>>, %arg5: memref<1x8xf32, #tpu.memory_space<vmem>>, %arg6: memref<64x8xf32, #tpu.memory_space<vmem>>, %arg7: memref<64x32xf32, #tpu.memory_space<vmem>>) attributes {dimension_semantics = [], scalar_prefetch = 0 : i64, scratch_operands = 0 : i64, tpu.core_type = #tpu.core_type<tc>} {
    %c0 = arith.constant 0 : index
    %c0_0 = arith.constant 0 : index
    %0 = vector.load %arg0[%c0, %c0_0] : memref<64x16xf32, #tpu.memory_space<vmem>>, vector<64x16xf32>
    %c0_1 = arith.constant 0 : index
    %c0_2 = arith.constant 0 : index
    %1 = vector.load %arg1[%c0_1, %c0_2] : memref<16x32xf32, #tpu.memory_space<vmem>>, vector<16x32xf32>
    %cst = arith.constant dense<0.000000e+00> : vector<64x32xf32>
    %2 = tpu.matmul %0, %1, %cst {dimension_numbers = #tpu.dot_dimension_numbers<[1], [0], [0], [1], [0, 0, 1, 1], [], []>} : vector<64x16xf32>, vector<16x32xf32>, vector<64x32xf32> -> vector<64x32xf32>
    %c0_3 = arith.constant 0 : index
    %c0_4 = arith.constant 0 : index
    %3 = vector.load %arg3[%c0_3, %c0_4] : memref<1x32xf32, #tpu.memory_space<vmem>>, vector<1x32xf32>
    %4 = vector.broadcast %3 : vector<1x32xf32> to vector<64x32xf32>
    %5 = arith.addf %2, %4 : vector<64x32xf32>
    %c0_5 = arith.constant 0 : index
    %c0_6 = arith.constant 0 : index
    %6 = vector.load %arg2[%c0_5, %c0_6] : memref<32x32xf32, #tpu.memory_space<vmem>>, vector<32x32xf32>
    %cst_7 = arith.constant 0.000000e+00 : f32
    %7 = vector.broadcast %cst_7 : f32 to vector<8x32xf32>
    %8 = vector.extract_strided_slice %5 {offsets = [0, 0], sizes = [8, 32], strides = [1, 1]} : vector<64x32xf32> to vector<8x32xf32>
    %cst_8 = arith.constant dense<0.000000e+00> : vector<8x32xf32>
    %9 = tpu.matmul %7, %6, %cst_8 {dimension_numbers = #tpu.dot_dimension_numbers<[1], [0], [0], [1], [0, 0, 1, 1], [], []>} : vector<8x32xf32>, vector<32x32xf32>, vector<8x32xf32> -> vector<8x32xf32>
    %10 = arith.addf %8, %9 : vector<8x32xf32>
    %cst_9 = arith.constant 0.000000e+00 : f32
    %11 = vector.broadcast %cst_9 : f32 to vector<8x32xf32>
    %12 = arith.maximumf %10, %11 : vector<8x32xf32>
    %13 = vector.extract_strided_slice %5 {offsets = [8, 0], sizes = [8, 32], strides = [1, 1]} : vector<64x32xf32> to vector<8x32xf32>
    %cst_10 = arith.constant dense<0.000000e+00> : vector<8x32xf32>
    %14 = tpu.matmul %12, %6, %cst_10 {dimension_numbers = #tpu.dot_dimension_numbers<[1], [0], [0], [1], [0, 0, 1, 1], [], []>} : vector<8x32xf32>, vector<32x32xf32>, vector<8x32xf32> -> vector<8x32xf32>
    %15 = arith.addf %13, %14 : vector<8x32xf32>
    %cst_11 = arith.constant 0.000000e+00 : f32
    %16 = vector.broadcast %cst_11 : f32 to vector<8x32xf32>
    %17 = arith.maximumf %15, %16 : vector<8x32xf32>
    %18 = vector.extract_strided_slice %5 {offsets = [16, 0], sizes = [8, 32], strides = [1, 1]} : vector<64x32xf32> to vector<8x32xf32>
    %cst_12 = arith.constant dense<0.000000e+00> : vector<8x32xf32>
    %19 = tpu.matmul %17, %6, %cst_12 {dimension_numbers = #tpu.dot_dimension_numbers<[1], [0], [0], [1], [0, 0, 1, 1], [], []>} : vector<8x32xf32>, vector<32x32xf32>, vector<8x32xf32> -> vector<8x32xf32>
    %20 = arith.addf %18, %19 : vector<8x32xf32>
    %cst_13 = arith.constant 0.000000e+00 : f32
    %21 = vector.broadcast %cst_13 : f32 to vector<8x32xf32>
    %22 = arith.maximumf %20, %21 : vector<8x32xf32>
    %23 = vector.extract_strided_slice %5 {offsets = [24, 0], sizes = [8, 32], strides = [1, 1]} : vector<64x32xf32> to vector<8x32xf32>
    %cst_14 = arith.constant dense<0.000000e+00> : vector<8x32xf32>
    %24 = tpu.matmul %22, %6, %cst_14 {dimension_numbers = #tpu.dot_dimension_numbers<[1], [0], [0], [1], [0, 0, 1, 1], [], []>} : vector<8x32xf32>, vector<32x32xf32>, vector<8x32xf32> -> vector<8x32xf32>
    %25 = arith.addf %23, %24 : vector<8x32xf32>
    %cst_15 = arith.constant 0.000000e+00 : f32
    %26 = vector.broadcast %cst_15 : f32 to vector<8x32xf32>
    %27 = arith.maximumf %25, %26 : vector<8x32xf32>
    %28 = vector.extract_strided_slice %5 {offsets = [32, 0], sizes = [8, 32], strides = [1, 1]} : vector<64x32xf32> to vector<8x32xf32>
    %cst_16 = arith.constant dense<0.000000e+00> : vector<8x32xf32>
    %29 = tpu.matmul %27, %6, %cst_16 {dimension_numbers = #tpu.dot_dimension_numbers<[1], [0], [0], [1], [0, 0, 1, 1], [], []>} : vector<8x32xf32>, vector<32x32xf32>, vector<8x32xf32> -> vector<8x32xf32>
    %30 = arith.addf %28, %29 : vector<8x32xf32>
    %cst_17 = arith.constant 0.000000e+00 : f32
    %31 = vector.broadcast %cst_17 : f32 to vector<8x32xf32>
    %32 = arith.maximumf %30, %31 : vector<8x32xf32>
    %33 = vector.extract_strided_slice %5 {offsets = [40, 0], sizes = [8, 32], strides = [1, 1]} : vector<64x32xf32> to vector<8x32xf32>
    %cst_18 = arith.constant dense<0.000000e+00> : vector<8x32xf32>
    %34 = tpu.matmul %32, %6, %cst_18 {dimension_numbers = #tpu.dot_dimension_numbers<[1], [0], [0], [1], [0, 0, 1, 1], [], []>} : vector<8x32xf32>, vector<32x32xf32>, vector<8x32xf32> -> vector<8x32xf32>
    %35 = arith.addf %33, %34 : vector<8x32xf32>
    %cst_19 = arith.constant 0.000000e+00 : f32
    %36 = vector.broadcast %cst_19 : f32 to vector<8x32xf32>
    %37 = arith.maximumf %35, %36 : vector<8x32xf32>
    %38 = vector.extract_strided_slice %5 {offsets = [48, 0], sizes = [8, 32], strides = [1, 1]} : vector<64x32xf32> to vector<8x32xf32>
    %cst_20 = arith.constant dense<0.000000e+00> : vector<8x32xf32>
    %39 = tpu.matmul %37, %6, %cst_20 {dimension_numbers = #tpu.dot_dimension_numbers<[1], [0], [0], [1], [0, 0, 1, 1], [], []>} : vector<8x32xf32>, vector<32x32xf32>, vector<8x32xf32> -> vector<8x32xf32>
    %40 = arith.addf %38, %39 : vector<8x32xf32>
    %cst_21 = arith.constant 0.000000e+00 : f32
    %41 = vector.broadcast %cst_21 : f32 to vector<8x32xf32>
    %42 = arith.maximumf %40, %41 : vector<8x32xf32>
    %43 = vector.extract_strided_slice %5 {offsets = [56, 0], sizes = [8, 32], strides = [1, 1]} : vector<64x32xf32> to vector<8x32xf32>
    %cst_22 = arith.constant dense<0.000000e+00> : vector<8x32xf32>
    %44 = tpu.matmul %42, %6, %cst_22 {dimension_numbers = #tpu.dot_dimension_numbers<[1], [0], [0], [1], [0, 0, 1, 1], [], []>} : vector<8x32xf32>, vector<32x32xf32>, vector<8x32xf32> -> vector<8x32xf32>
    %45 = arith.addf %43, %44 : vector<8x32xf32>
    %cst_23 = arith.constant 0.000000e+00 : f32
    %46 = vector.broadcast %cst_23 : f32 to vector<8x32xf32>
    %47 = arith.maximumf %45, %46 : vector<8x32xf32>
    %48 = tpu.concatenate %12, %17, %22, %27, %32, %37, %42, %47 in 0 : vector<8x32xf32>, vector<8x32xf32>, vector<8x32xf32>, vector<8x32xf32>, vector<8x32xf32>, vector<8x32xf32>, vector<8x32xf32>, vector<8x32xf32> -> vector<64x32xf32>
    %c0_24 = arith.constant 0 : index
    %c0_25 = arith.constant 0 : index
    %49 = vector.load %arg7[%c0_24, %c0_25] : memref<64x32xf32, #tpu.memory_space<vmem>>, vector<64x32xf32>
    tpu.vector_store %arg7[%c0_24, %c0_25], %48 {strides = array<i32>} : memref<64x32xf32, #tpu.memory_space<vmem>>, vector<64x32xf32>,
    %c0_26 = arith.constant 0 : index
    %c0_27 = arith.constant 0 : index
    %50 = vector.load %arg4[%c0_26, %c0_27] : memref<32x8xf32, #tpu.memory_space<vmem>>, vector<32x8xf32>
    %cst_28 = arith.constant dense<0.000000e+00> : vector<64x8xf32>
    %51 = tpu.matmul %48, %50, %cst_28 {dimension_numbers = #tpu.dot_dimension_numbers<[1], [0], [0], [1], [0, 0, 1, 1], [], []>} : vector<64x32xf32>, vector<32x8xf32>, vector<64x8xf32> -> vector<64x8xf32>
    %c0_29 = arith.constant 0 : index
    %c0_30 = arith.constant 0 : index
    %52 = vector.load %arg5[%c0_29, %c0_30] : memref<1x8xf32, #tpu.memory_space<vmem>>, vector<1x8xf32>
    %53 = vector.broadcast %52 : vector<1x8xf32> to vector<64x8xf32>
    %54 = arith.addf %51, %53 : vector<64x8xf32>
    %c0_31 = arith.constant 0 : index
    %c0_32 = arith.constant 0 : index
    %55 = vector.load %arg6[%c0_31, %c0_32] : memref<64x8xf32, #tpu.memory_space<vmem>>, vector<64x8xf32>
    tpu.vector_store %arg6[%c0_31, %c0_32], %54 {strides = array<i32>} : memref<64x8xf32, #tpu.memory_space<vmem>>, vector<64x8xf32>,
    return
  }
}

</mosaic_0001>

<llo_original>
// kernel: tpu_custom_call.1
$region0: #{tpu_custom_call.1}
  #allocation0 [shape = 'u32[]', space=smem, size = 0x4, offset = 0x4, fixed_abs, tag = 'smem constant byte address 0x4 - core index']
  #allocation1 [shape = 'u32[144,128]{1,0:T(1,128)}', space=vmem, size = 0x12000, scoped, tag = 'internal scratch']
  %s0 = inlined_call_operand.vmem [shape: f32[64,16], index: 0, kind: input, shape index: {}]
  %s1 = inlined_call_operand.vmem [shape: f32[16,32], index: 1, kind: input, shape index: {}]
  %s2 = inlined_call_operand.vmem [shape: f32[32,32], index: 2, kind: input, shape index: {}]
  %s3 = inlined_call_operand.vmem [shape: f32[1,32], index: 3, kind: input, shape index: {}]
  %s4 = inlined_call_operand.vmem [shape: f32[32,8], index: 4, kind: input, shape index: {}]
  %s5 = inlined_call_operand.vmem [shape: f32[1,8], index: 5, kind: input, shape index: {}]
  %s6 = inlined_call_operand.vmem [shape: f32[64,8], index: 6, kind: output, shape index: {0}]
  %s7 = inlined_call_operand.vmem [shape: f32[64,32], index: 7, kind: output, shape index: {1}]
  %8 = xla_tuple %s6, %s7
  %s9 = sld [smem:[#allocation0]]
  $region42: #{tpu_custom_call.1} parent=0
    _
  %s11 = ssub.s32 1, %s9
  %s12 = scalar_select 0, %s11, %s9
  // Predicated region
  $region2: #{tpu_custom_call.1} parent=0 // pred_check
    _
  $region3: #{tpu_custom_call.1} parent=0 // pred_check_branch
    %14 = sbr.rel (0) target = $region5
  $region4: #{tpu_custom_call.1} parent=0 // pred_region
    _
  $region5: #{tpu_custom_call.1} parent=0 // pred_fallthru
    _
  // Predicated region
  $region6: #{tpu_custom_call.1} parent=0 // pred_check
    _
  $region7: #{tpu_custom_call.1} parent=0 // pred_check_branch
    %16 = sbr.rel (0) target = $region9
  $region8: #{tpu_custom_call.1} parent=0 // pred_region
    _
  $region9: #{tpu_custom_call.1} parent=0 // pred_fallthru
    _
  // Predicated region
  $region10: #{tpu_custom_call.1} parent=0 // pred_check
    _
  $region11: #{tpu_custom_call.1} parent=0 // pred_check_branch
    %18 = sbr.rel (0) target = $region13
  $region12: #{tpu_custom_call.1} parent=0 // pred_region
    _
  $region13: #{tpu_custom_call.1} parent=0 // pred_fallthru
    _
  // Predicated region
  $region14: #{tpu_custom_call.1} parent=0 // pred_check
    _
  $region15: #{tpu_custom_call.1} parent=0 // pred_check_branch
    %20 = sbr.rel (0) target = $region17
  $region16: #{tpu_custom_call.1} parent=0 // pred_region
    _
  $region17: #{tpu_custom_call.1} parent=0 // pred_fallthru
    _
  // Predicated region
  $region18: #{tpu_custom_call.1} parent=0 // pred_check
    _
  $region19: #{tpu_custom_call.1} parent=0 // pred_check_branch
    %22 = sbr.rel (0) target = $region21
  $region20: #{tpu_custom_call.1} parent=0 // pred_region
    _
  $region21: #{tpu_custom_call.1} parent=0 // pred_fallthru
    _
  // Predicated region
  $region22: #{tpu_custom_call.1} parent=0 // pred_check
    _
  $region23: #{tpu_custom_call.1} parent=0 // pred_check_branch
    %24 = sbr.rel (0) target = $region25
  $region24: #{tpu_custom_call.1} parent=0 // pred_region
    _
  $region25: #{tpu_custom_call.1} parent=0 // pred_fallthru
    _
  %v25 = vld [vmem:[%s0] sm:$0xff]
  %v26 = vld [vmem:[%s0 + $0x8] sm:$0xff]
  %v27 = vld [vmem:[%s0 + $0x10] sm:$0xff]
  %v28 = vld [vmem:[%s0 + $0x18] sm:$0xff]
  %v29 = vld [vmem:[%s0 + $0x20] sm:$0xff]
  %v30 = vld [vmem:[%s0 + $0x28] sm:$0xff]
  %v31 = vld [vmem:[%s0 + $0x30] sm:$0xff]
  %v32 = vld [vmem:[%s0 + $0x38] sm:$0xff]
  %v33 = vld [vmem:[%s1] sm:$0xff]
  %v34 = vld [vmem:[%s1 + $0x8] sm:$0xff]
  %v35 = vld [vmem:[%s3] sm:$0x1]
  %v37 = vlaneseq
  %v38 = vshrl.u32 %v37, 7
  %v39 = vsub.s32 0, %v38
  %v40 = vrot.slane %v35, %v39
  %vm42 = vcmask 130048
  %v44 = vsel %vm42, %v25, 0
  %v47 = vsel %vm42, %v26, 0
  %v50 = vsel %vm42, %v27, 0
  %v53 = vsel %vm42, %v28, 0
  %v56 = vsel %vm42, %v29, 0
  %v59 = vsel %vm42, %v30, 0
  %v62 = vsel %vm42, %v31, 0
  %v65 = vsel %vm42, %v32, 0
  %67 = vmatprep.subr.mxu0 0.0
  %68 = vmatpush1.msra.mxu0 0.0
  %69 = vmatprep.subr.mxu0 0.0
  %70 = vmatpush1.msra.mxu0 0.0
  %71 = vmatprep.subr.mxu0 0.0
  %72 = vmatpush1.msra.mxu0 0.0
  %73 = vmatprep.subr.mxu0 0.0
  %74 = vmatpush1.msra.mxu0 0.0
  %75 = vmatprep.subr.mxu0 0.0
  %76 = vmatpush1.msra.mxu0 0.0
  %77 = vmatprep.subr.mxu0 0.0
  %78 = vmatpush1.msra.mxu0 0.0
  %79 = vmatprep.subr.mxu0 0.0
  %80 = vmatpush1.msra.mxu0 0.0
  %81 = vmatprep.subr.mxu0 0.0
  %82 = vmatpush1.msra.mxu0 0.0
  %83 = vmatprep.subr.mxu0 0.0
  %84 = vmatpush1.msra.mxu0 0.0
  %85 = vmatprep.subr.mxu0 0.0
  %86 = vmatpush1.msra.mxu0 0.0
  %87 = vmatprep.subr.mxu0 0.0
  %88 = vmatpush1.msra.mxu0 0.0
  %89 = vmatprep.subr.mxu0 0.0
  %90 = vmatpush1.msra.mxu0 0.0
  %91 = vmatprep.subr.mxu0 0.0
  %92 = vmatpush1.msra.mxu0 0.0
  %93 = vmatprep.subr.mxu0 0.0
  %94 = vmatpush1.msra.mxu0 0.0
  %95 = vmatprep.subr.mxu0 0.0
  %96 = vmatpush1.msra.mxu0 %v34
  %97 = vmatprep.subr.mxu0 0.0
  %98 = vmatpush1.msra.mxu0 %v33
  %99 = vmatprep.subr.mxu0 0.0
  %100 = vmatpush2.msra.mxu0 0.0
  %101 = vmatprep.subr.mxu0 0.0
  %102 = vmatpush2.msra.mxu0 0.0
  %103 = vmatprep.subr.mxu0 0.0
  %104 = vmatpush2.msra.mxu0 0.0
  %105 = vmatprep.subr.mxu0 0.0
  %106 = vmatpush2.msra.mxu0 0.0
  %107 = vmatprep.subr.mxu0 0.0
  %108 = vmatpush2.msra.mxu0 0.0
  %109 = vmatprep.subr.mxu0 0.0
  %110 = vmatpush2.msra.mxu0 0.0
  %111 = vmatprep.subr.mxu0 0.0
  %112 = vmatpush2.msra.mxu0 0.0
  %113 = vmatprep.subr.mxu0 0.0
  %114 = vmatpush2.msra.mxu0 0.0
  %115 = vmatprep.subr.mxu0 0.0
  %116 = vmatpush2.msra.mxu0 0.0
  %117 = vmatprep.subr.mxu0 0.0
  %118 = vmatpush2.msra.mxu0 0.0
  %119 = vmatprep.subr.mxu0 0.0
  %120 = vmatpush2.msra.mxu0 0.0
  %121 = vmatprep.subr.mxu0 0.0
  %122 = vmatpush2.msra.mxu0 0.0
  %123 = vmatprep.subr.mxu0 0.0
  %124 = vmatpush2.msra.mxu0 0.0
  %125 = vmatprep.subr.mxu0 0.0
  %126 = vmatpush2.msra.mxu0 0.0
  %127 = vmatprep.subr.mxu0 0.0
  %128 = vmatpush2.msra.mxu0 0.0
  %129 = vmatprep.subr.mxu0 0.0
  %130 = vmatpush2.msra.mxu0 0.0
  %131 = vmatprep.mubr.f32.mxu0 0.0
  %132 = vmatmul.mubr.f32.gmra.mxu0 %v44
  %v133 = vpop.f32.mrf.mxu0
  %v134 = vadd.f32 %v40, %v133
  %v135 = vpop.f32.mrf.mxu0
  %136 = vmatprep.mubr.f32.mxu0 0.0
  %137 = vmatmul.mubr.f32.gmra.mxu0 %v47
  %v138 = vpop.f32.mrf.mxu0
  %v139 = vadd.f32 %v40, %v138
  %v140 = vpop.f32.mrf.mxu0
  %141 = vmatprep.mubr.f32.mxu0 0.0
  %142 = vmatmul.mubr.f32.gmra.mxu0 %v50
  %v143 = vpop.f32.mrf.mxu0
  %v144 = vadd.f32 %v40, %v143
  %v145 = vpop.f32.mrf.mxu0
  %146 = vmatprep.mubr.f32.mxu0 0.0
  %147 = vmatmul.mubr.f32.gmra.mxu0 %v53
  %v148 = vpop.f32.mrf.mxu0
  %v149 = vadd.f32 %v40, %v148
  %v150 = vpop.f32.mrf.mxu0
  %151 = vmatprep.mubr.f32.mxu0 0.0
  %152 = vmatmul.mubr.f32.gmra.mxu0 %v56
  %v153 = vpop.f32.mrf.mxu0
  %v154 = vadd.f32 %v40, %v153
  %v155 = vpop.f32.mrf.mxu0
  %156 = vmatprep.mubr.f32.mxu0 0.0
  %157 = vmatmul.mubr.f32.gmra.mxu0 %v59
  %v158 = vpop.f32.mrf.mxu0
  %v159 = vadd.f32 %v40, %v158
  %v160 = vpop.f32.mrf.mxu0
  %161 = vmatprep.mubr.f32.mxu0 0.0
  %162 = vmatmul.mubr.f32.gmra.mxu0 %v62
  %v163 = vpop.f32.mrf.mxu0
  %v164 = vadd.f32 %v40, %v163
  %v165 = vpop.f32.mrf.mxu0
  %166 = vmatprep.mubr.f32.mxu0 0.0
  %167 = vmatmul.mubr.f32.gmra.mxu0 %v65
  %v168 = vpop.f32.mrf.mxu0
  %v169 = vadd.f32 %v40, %v168
  %v170 = vpop.f32.mrf.mxu0
  %171 = vdwg.mxu0
  %v172 = vld [vmem:[%s2] sm:$0xff]
  %v173 = vld [vmem:[%s2 + $0x8] sm:$0xff]
  %v174 = vld [vmem:[%s2 + $0x10] sm:$0xff]
  %v175 = vld [vmem:[%s2 + $0x18] sm:$0xff]
  %vm176 = vcmask 261120
  %v178 = vsel %vm176, 0.0, 0
  %180 = vmatprep.subr.mxu0 0.0
  %181 = vmatpush1.msra.mxu0 0.0
  %182 = vmatprep.subr.mxu0 0.0
  %183 = vmatpush1.msra.mxu0 0.0
  %184 = vmatprep.subr.mxu0 0.0
  %185 = vmatpush1.msra.mxu0 0.0
  %186 = vmatprep.subr.mxu0 0.0
  %187 = vmatpush1.msra.mxu0 0.0
  %188 = vmatprep.subr.mxu0 0.0
  %189 = vmatpush1.msra.mxu0 0.0
  %190 = vmatprep.subr.mxu0 0.0
  %191 = vmatpush1.msra.mxu0 0.0
  %192 = vmatprep.subr.mxu0 0.0
  %193 = vmatpush1.msra.mxu0 0.0
  %194 = vmatprep.subr.mxu0 0.0
  %195 = vmatpush1.msra.mxu0 0.0
  %196 = vmatprep.subr.mxu0 0.0
  %197 = vmatpush1.msra.mxu0 0.0
  %198 = vmatprep.subr.mxu0 0.0
  %199 = vmatpush1.msra.mxu0 0.0
  %200 = vmatprep.subr.mxu0 0.0
  %201 = vmatpush1.msra.mxu0 0.0
  %202 = vmatprep.subr.mxu0 0.0
  %203 = vmatpush1.msra.mxu0 0.0
  %204 = vmatprep.subr.mxu0 0.0
  %205 = vmatpush1.msra.mxu0 %v175
  %206 = vmatprep.subr.mxu0 0.0
  %207 = vmatpush1.msra.mxu0 %v174
  %208 = vmatprep.subr.mxu0 0.0
  %209 = vmatpush1.msra.mxu0 %v173
  %210 = vmatprep.subr.mxu0 0.0
  %211 = vmatpush1.msra.mxu0 %v172
  %212 = vmatprep.subr.mxu0 0.0
  %213 = vmatpush2.msra.mxu0 0.0
  %214 = vmatprep.subr.mxu0 0.0
  %215 = vmatpush2.msra.mxu0 0.0
  %216 = vmatprep.subr.mxu0 0.0
  %217 = vmatpush2.msra.mxu0 0.0
  %218 = vmatprep.subr.mxu0 0.0
  %219 = vmatpush2.msra.mxu0 0.0
  %220 = vmatprep.subr.mxu0 0.0
  %221 = vmatpush2.msra.mxu0 0.0
  %222 = vmatprep.subr.mxu0 0.0
  %223 = vmatpush2.msra.mxu0 0.0
  %224 = vmatprep.subr.mxu0 0.0
  %225 = vmatpush2.msra.mxu0 0.0
  %226 = vmatprep.subr.mxu0 0.0
  %227 = vmatpush2.msra.mxu0 0.0
  %228 = vmatprep.subr.mxu0 0.0
  %229 = vmatpush2.msra.mxu0 0.0
  %230 = vmatprep.subr.mxu0 0.0
  %231 = vmatpush2.msra.mxu0 0.0
  %232 = vmatprep.subr.mxu0 0.0
  %233 = vmatpush2.msra.mxu0 0.0
  %234 = vmatprep.subr.mxu0 0.0
  %235 = vmatpush2.msra.mxu0 0.0
  %236 = vmatprep.subr.mxu0 0.0
  %237 = vmatpush2.msra.mxu0 0.0
  %238 = vmatprep.subr.mxu0 0.0
  %239 = vmatpush2.msra.mxu0 0.0
  %240 = vmatprep.subr.mxu0 0.0
  %241 = vmatpush2.msra.mxu0 0.0
  %242 = vmatprep.subr.mxu0 0.0
  %243 = vmatpush2.msra.mxu0 0.0
  %244 = vmatprep.mubr.f32.mxu0 0.0
  %245 = vmatmul.mubr.f32.gmra.mxu0 %v178
  %v246 = vpop.f32.mrf.mxu0
  %v247 = vadd.f32 0.0, %v246
  %v248 = vpop.f32.mrf.mxu0
  %249 = vdwg.mxu0
  %v250 = vadd.f32 %v134, %v247
  %v251 = vmax.f32 %v250, 0.0
  %v253 = vsel %vm176, %v251, 0
  %255 = vmatprep.subr.mxu0 0.0
  %256 = vmatpush1.msra.mxu0 0.0
  %257 = vmatprep.subr.mxu0 0.0
  %258 = vmatpush1.msra.mxu0 0.0
  %259 = vmatprep.subr.mxu0 0.0
  %260 = vmatpush1.msra.mxu0 0.0
  %261 = vmatprep.subr.mxu0 0.0
  %262 = vmatpush1.msra.mxu0 0.0
  %263 = vmatprep.subr.mxu0 0.0
  %264 = vmatpush1.msra.mxu0 0.0
  %265 = vmatprep.subr.mxu0 0.0
  %266 = vmatpush1.msra.mxu0 0.0
  %267 = vmatprep.subr.mxu0 0.0
  %268 = vmatpush1.msra.mxu0 0.0
  %269 = vmatprep.subr.mxu0 0.0
  %270 = vmatpush1.msra.mxu0 0.0
  %271 = vmatprep.subr.mxu0 0.0
  %272 = vmatpush1.msra.mxu0 0.0
  %273 = vmatprep.subr.mxu0 0.0
  %274 = vmatpush1.msra.mxu0 0.0
  %275 = vmatprep.subr.mxu0 0.0
  %276 = vmatpush1.msra.mxu0 0.0
  %277 = vmatprep.subr.mxu0 0.0
  %278 = vmatpush1.msra.mxu0 0.0
  %279 = vmatprep.subr.mxu0 0.0
  %280 = vmatpush1.msra.mxu0 %v175
  %281 = vmatprep.subr.mxu0 0.0
  %282 = vmatpush1.msra.mxu0 %v174
  %283 = vmatprep.subr.mxu0 0.0
  %284 = vmatpush1.msra.mxu0 %v173
  %285 = vmatprep.subr.mxu0 0.0
  %286 = vmatpush1.msra.mxu0 %v172
  %287 = vmatprep.subr.mxu0 0.0
  %288 = vmatpush2.msra.mxu0 0.0
  %289 = vmatprep.subr.mxu0 0.0
  %290 = vmatpush2.msra.mxu0 0.0
  %291 = vmatprep.subr.mxu0 0.0
  %292 = vmatpush2.msra.mxu0 0.0
  %293 = vmatprep.subr.mxu0 0.0
  %294 = vmatpush2.msra.mxu0 0.0
  %295 = vmatprep.subr.mxu0 0.0
  %296 = vmatpush2.msra.mxu0 0.0
  %297 = vmatprep.subr.mxu0 0.0
  %298 = vmatpush2.msra.mxu0 0.0
  %299 = vmatprep.subr.mxu0 0.0
  %300 = vmatpush2.msra.mxu0 0.0
  %301 = vmatprep.subr.mxu0 0.0
  %302 = vmatpush2.msra.mxu0 0.0
  %303 = vmatprep.subr.mxu0 0.0
  %304 = vmatpush2.msra.mxu0 0.0
  %305 = vmatprep.subr.mxu0 0.0
  %306 = vmatpush2.msra.mxu0 0.0
  %307 = vmatprep.subr.mxu0 0.0
  %308 = vmatpush2.msra.mxu0 0.0
  %309 = vmatprep.subr.mxu0 0.0
  %310 = vmatpush2.msra.mxu0 0.0
  %311 = vmatprep.subr.mxu0 0.0
  %312 = vmatpush2.msra.mxu0 0.0
  %313 = vmatprep.subr.mxu0 0.0
  %314 = vmatpush2.msra.mxu0 0.0
  %315 = vmatprep.subr.mxu0 0.0
  %316 = vmatpush2.msra.mxu0 0.0
  %317 = vmatprep.subr.mxu0 0.0
  %318 = vmatpush2.msra.mxu0 0.0
  %319 = vmatprep.mubr.f32.mxu0 0.0
  %320 = vmatmul.mubr.f32.gmra.mxu0 %v253
  %v321 = vpop.f32.mrf.mxu0
  %v322 = vadd.f32 0.0, %v321
  %v323 = vpop.f32.mrf.mxu0
  %324 = vdwg.mxu0
  %v325 = vadd.f32 %v139, %v322
  %v326 = vmax.f32 %v325, 0.0
  %v328 = vsel %vm176, %v326, 0
  %330 = vmatprep.subr.mxu0 0.0
  %331 = vmatpush1.msra.mxu0 0.0
  %332 = vmatprep.subr.mxu0 0.0
  %333 = vmatpush1.msra.mxu0 0.0
  %334 = vmatprep.subr.mxu0 0.0
  %335 = vmatpush1.msra.mxu0 0.0
  %336 = vmatprep.subr.mxu0 0.0
  %337 = vmatpush1.msra.mxu0 0.0
  %338 = vmatprep.subr.mxu0 0.0
  %339 = vmatpush1.msra.mxu0 0.0
  %340 = vmatprep.subr.mxu0 0.0
  %341 = vmatpush1.msra.mxu0 0.0
  %342 = vmatprep.subr.mxu0 0.0
  %343 = vmatpush1.msra.mxu0 0.0
  %344 = vmatprep.subr.mxu0 0.0
  %345 = vmatpush1.msra.mxu0 0.0
  %346 = vmatprep.subr.mxu0 0.0
  %347 = vmatpush1.msra.mxu0 0.0
  %348 = vmatprep.subr.mxu0 0.0
  %349 = vmatpush1.msra.mxu0 0.0
  %350 = vmatprep.subr.mxu0 0.0
  %351 = vmatpush1.msra.mxu0 0.0
  %352 = vmatprep.subr.mxu0 0.0
  %353 = vmatpush1.msra.mxu0 0.0
  %354 = vmatprep.subr.mxu0 0.0
  %355 = vmatpush1.msra.mxu0 %v175
  %356 = vmatprep.subr.mxu0 0.0
  %357 = vmatpush1.msra.mxu0 %v174
  %358 = vmatprep.subr.mxu0 0.0
  %359 = vmatpush1.msra.mxu0 %v173
  %360 = vmatprep.subr.mxu0 0.0
  %361 = vmatpush1.msra.mxu0 %v172
  %362 = vmatprep.subr.mxu0 0.0
  %363 = vmatpush2.msra.mxu0 0.0
  %364 = vmatprep.subr.mxu0 0.0
  %365 = vmatpush2.msra.mxu0 0.0
  %366 = vmatprep.subr.mxu0 0.0
  %367 = vmatpush2.msra.mxu0 0.0
  %368 = vmatprep.subr.mxu0 0.0
  %369 = vmatpush2.msra.mxu0 0.0
  %370 = vmatprep.subr.mxu0 0.0
  %371 = vmatpush2.msra.mxu0 0.0
  %372 = vmatprep.subr.mxu0 0.0
  %373 = vmatpush2.msra.mxu0 0.0
  %374 = vmatprep.subr.mxu0 0.0
  %375 = vmatpush2.msra.mxu0 0.0
  %376 = vmatprep.subr.mxu0 0.0
  %377 = vmatpush2.msra.mxu0 0.0
  %378 = vmatprep.subr.mxu0 0.0
  %379 = vmatpush2.msra.mxu0 0.0
  %380 = vmatprep.subr.mxu0 0.0
  %381 = vmatpush2.msra.mxu0 0.0
  %382 = vmatprep.subr.mxu0 0.0
  %383 = vmatpush2.msra.mxu0 0.0
  %384 = vmatprep.subr.mxu0 0.0
  %385 = vmatpush2.msra.mxu0 0.0
  %386 = vmatprep.subr.mxu0 0.0
  %387 = vmatpush2.msra.mxu0 0.0
  %388 = vmatprep.subr.mxu0 0.0
  %389 = vmatpush2.msra.mxu0 0.0
  %390 = vmatprep.subr.mxu0 0.0
  %391 = vmatpush2.msra.mxu0 0.0
  %392 = vmatprep.subr.mxu0 0.0
  %393 = vmatpush2.msra.mxu0 0.0
  %394 = vmatprep.mubr.f32.mxu0 0.0
  %395 = vmatmul.mubr.f32.gmra.mxu0 %v328
  %v396 = vpop.f32.mrf.mxu0
  %v397 = vadd.f32 0.0, %v396
  %v398 = vpop.f32.mrf.mxu0
  %399 = vdwg.mxu0
  %v400 = vadd.f32 %v144, %v397
  %v401 = vmax.f32 %v400, 0.0
  %v403 = vsel %vm176, %v401, 0
  %405 = vmatprep.subr.mxu0 0.0
  %406 = vmatpush1.msra.mxu0 0.0
  %407 = vmatprep.subr.mxu0 0.0
  %408 = vmatpush1.msra.mxu0 0.0
  %409 = vmatprep.subr.mxu0 0.0
  %410 = vmatpush1.msra.mxu0 0.0
  %411 = vmatprep.subr.mxu0 0.0
  %412 = vmatpush1.msra.mxu0 0.0
  %413 = vmatprep.subr.mxu0 0.0
  %414 = vmatpush1.msra.mxu0 0.0
  %415 = vmatprep.subr.mxu0 0.0
  %416 = vmatpush1.msra.mxu0 0.0
  %417 = vmatprep.subr.mxu0 0.0
  %418 = vmatpush1.msra.mxu0 0.0
  %419 = vmatprep.subr.mxu0 0.0
  %420 = vmatpush1.msra.mxu0 0.0
  %421 = vmatprep.subr.mxu0 0.0
  %422 = vmatpush1.msra.mxu0 0.0
  %423 = vmatprep.subr.mxu0 0.0
  %424 = vmatpush1.msra.mxu0 0.0
  %425 = vmatprep.subr.mxu0 0.0
  %426 = vmatpush1.msra.mxu0 0.0
  %427 = vmatprep.subr.mxu0 0.0
  %428 = vmatpush1.msra.mxu0 0.0
  %429 = vmatprep.subr.mxu0 0.0
  %430 = vmatpush1.msra.mxu0 %v175
  %431 = vmatprep.subr.mxu0 0.0
  %432 = vmatpush1.msra.mxu0 %v174
  %433 = vmatprep.subr.mxu0 0.0
  %434 = vmatpush1.msra.mxu0 %v173
  %435 = vmatprep.subr.mxu0 0.0
  %436 = vmatpush1.msra.mxu0 %v172
  %437 = vmatprep.subr.mxu0 0.0
  %438 = vmatpush2.msra.mxu0 0.0
  %439 = vmatprep.subr.mxu0 0.0
  %440 = vmatpush2.msra.mxu0 0.0
  %441 = vmatprep.subr.mxu0 0.0
  %442 = vmatpush2.msra.mxu0 0.0
  %443 = vmatprep.subr.mxu0 0.0
  %444 = vmatpush2.msra.mxu0 0.0
  %445 = vmatprep.subr.mxu0 0.0
  %446 = vmatpush2.msra.mxu0 0.0
  %447 = vmatprep.subr.mxu0 0.0
  %448 = vmatpush2.msra.mxu0 0.0
  %449 = vmatprep.subr.mxu0 0.0
  %450 = vmatpush2.msra.mxu0 0.0
  %451 = vmatprep.subr.mxu0 0.0
  %452 = vmatpush2.msra.mxu0 0.0
  %453 = vmatprep.subr.mxu0 0.0
  %454 = vmatpush2.msra.mxu0 0.0
  %455 = vmatprep.subr.mxu0 0.0
  %456 = vmatpush2.msra.mxu0 0.0
  %457 = vmatprep.subr.mxu0 0.0
  %458 = vmatpush2.msra.mxu0 0.0
  %459 = vmatprep.subr.mxu0 0.0
  %460 = vmatpush2.msra.mxu0 0.0
  %461 = vmatprep.subr.mxu0 0.0
  %462 = vmatpush2.msra.mxu0 0.0
  %463 = vmatprep.subr.mxu0 0.0
  %464 = vmatpush2.msra.mxu0 0.0
  %465 = vmatprep.subr.mxu0 0.0
  %466 = vmatpush2.msra.mxu0 0.0
  %467 = vmatprep.subr.mxu0 0.0
  %468 = vmatpush2.msra.mxu0 0.0
  %469 = vmatprep.mubr.f32.mxu0 0.0
  %470 = vmatmul.mubr.f32.gmra.mxu0 %v403
  %v471 = vpop.f32.mrf.mxu0
  %v472 = vadd.f32 0.0, %v471
  %v473 = vpop.f32.mrf.mxu0
  %474 = vdwg.mxu0
  %v475 = vadd.f32 %v149, %v472
  %v476 = vmax.f32 %v475, 0.0
  %v478 = vsel %vm176, %v476, 0
  %480 = vmatprep.subr.mxu0 0.0
  %481 = vmatpush1.msra.mxu0 0.0
  %482 = vmatprep.subr.mxu0 0.0
  %483 = vmatpush1.msra.mxu0 0.0
  %484 = vmatprep.subr.mxu0 0.0
  %485 = vmatpush1.msra.mxu0 0.0
  %486 = vmatprep.subr.mxu0 0.0
  %487 = vmatpush1.msra.mxu0 0.0
  %488 = vmatprep.subr.mxu0 0.0
  %489 = vmatpush1.msra.mxu0 0.0
  %490 = vmatprep.subr.mxu0 0.0
  %491 = vmatpush1.msra.mxu0 0.0
  %492 = vmatprep.subr.mxu0 0.0
  %493 = vmatpush1.msra.mxu0 0.0
  %494 = vmatprep.subr.mxu0 0.0
  %495 = vmatpush1.msra.mxu0 0.0
  %496 = vmatprep.subr.mxu0 0.0
  %497 = vmatpush1.msra.mxu0 0.0
  %498 = vmatprep.subr.mxu0 0.0
  %499 = vmatpush1.msra.mxu0 0.0
  %500 = vmatprep.subr.mxu0 0.0
  %501 = vmatpush1.msra.mxu0 0.0
  %502 = vmatprep.subr.mxu0 0.0
  %503 = vmatpush1.msra.mxu0 0.0
  %504 = vmatprep.subr.mxu0 0.0
  %505 = vmatpush1.msra.mxu0 %v175
  %506 = vmatprep.subr.mxu0 0.0
  %507 = vmatpush1.msra.mxu0 %v174
  %508 = vmatprep.subr.mxu0 0.0
  %509 = vmatpush1.msra.mxu0 %v173
  %510 = vmatprep.subr.mxu0 0.0
  %511 = vmatpush1.msra.mxu0 %v172
  %512 = vmatprep.subr.mxu0 0.0
  %513 = vmatpush2.msra.mxu0 0.0
  %514 = vmatprep.subr.mxu0 0.0
  %515 = vmatpush2.msra.mxu0 0.0
  %516 = vmatprep.subr.mxu0 0.0
  %517 = vmatpush2.msra.mxu0 0.0
  %518 = vmatprep.subr.mxu0 0.0
  %519 = vmatpush2.msra.mxu0 0.0
  %520 = vmatprep.subr.mxu0 0.0
  %521 = vmatpush2.msra.mxu0 0.0
  %522 = vmatprep.subr.mxu0 0.0
  %523 = vmatpush2.msra.mxu0 0.0
  %524 = vmatprep.subr.mxu0 0.0
  %525 = vmatpush2.msra.mxu0 0.0
  %526 = vmatprep.subr.mxu0 0.0
  %527 = vmatpush2.msra.mxu0 0.0
  %528 = vmatprep.subr.mxu0 0.0
  %529 = vmatpush2.msra.mxu0 0.0
  %530 = vmatprep.subr.mxu0 0.0
  %531 = vmatpush2.msra.mxu0 0.0
  %532 = vmatprep.subr.mxu0 0.0
  %533 = vmatpush2.msra.mxu0 0.0
  %534 = vmatprep.subr.mxu0 0.0
  %535 = vmatpush2.msra.mxu0 0.0
  %536 = vmatprep.subr.mxu0 0.0
  %537 = vmatpush2.msra.mxu0 0.0
  %538 = vmatprep.subr.mxu0 0.0
  %539 = vmatpush2.msra.mxu0 0.0
  %540 = vmatprep.subr.mxu0 0.0
  %541 = vmatpush2.msra.mxu0 0.0
  %542 = vmatprep.subr.mxu0 0.0
  %543 = vmatpush2.msra.mxu0 0.0
  %544 = vmatprep.mubr.f32.mxu0 0.0
  %545 = vmatmul.mubr.f32.gmra.mxu0 %v478
  %v546 = vpop.f32.mrf.mxu0
  %v547 = vadd.f32 0.0, %v546
  %v548 = vpop.f32.mrf.mxu0
  %549 = vdwg.mxu0
  %v550 = vadd.f32 %v154, %v547
  %v551 = vmax.f32 %v550, 0.0
  %v553 = vsel %vm176, %v551, 0
  %555 = vmatprep.subr.mxu0 0.0
  %556 = vmatpush1.msra.mxu0 0.0
  %557 = vmatprep.subr.mxu0 0.0
  %558 = vmatpush1.msra.mxu0 0.0
  %559 = vmatprep.subr.mxu0 0.0
  %560 = vmatpush1.msra.mxu0 0.0
  %561 = vmatprep.subr.mxu0 0.0
  %562 = vmatpush1.msra.mxu0 0.0
  %563 = vmatprep.subr.mxu0 0.0
  %564 = vmatpush1.msra.mxu0 0.0
  %565 = vmatprep.subr.mxu0 0.0
  %566 = vmatpush1.msra.mxu0 0.0
  %567 = vmatprep.subr.mxu0 0.0
  %568 = vmatpush1.msra.mxu0 0.0
  %569 = vmatprep.subr.mxu0 0.0
  %570 = vmatpush1.msra.mxu0 0.0
  %571 = vmatprep.subr.mxu0 0.0
  %572 = vmatpush1.msra.mxu0 0.0
  %573 = vmatprep.subr.mxu0 0.0
  %574 = vmatpush1.msra.mxu0 0.0
  %575 = vmatprep.subr.mxu0 0.0
  %576 = vmatpush1.msra.mxu0 0.0
  %577 = vmatprep.subr.mxu0 0.0
  %578 = vmatpush1.msra.mxu0 0.0
  %579 = vmatprep.subr.mxu0 0.0
  %580 = vmatpush1.msra.mxu0 %v175
  %581 = vmatprep.subr.mxu0 0.0
  %582 = vmatpush1.msra.mxu0 %v174
  %583 = vmatprep.subr.mxu0 0.0
  %584 = vmatpush1.msra.mxu0 %v173
  %585 = vmatprep.subr.mxu0 0.0
  %586 = vmatpush1.msra.mxu0 %v172
  %587 = vmatprep.subr.mxu0 0.0
  %588 = vmatpush2.msra.mxu0 0.0
  %589 = vmatprep.subr.mxu0 0.0
  %590 = vmatpush2.msra.mxu0 0.0
  %591 = vmatprep.subr.mxu0 0.0
  %592 = vmatpush2.msra.mxu0 0.0
  %593 = vmatprep.subr.mxu0 0.0
  %594 = vmatpush2.msra.mxu0 0.0
  %595 = vmatprep.subr.mxu0 0.0
  %596 = vmatpush2.msra.mxu0 0.0
  %597 = vmatprep.subr.mxu0 0.0
  %598 = vmatpush2.msra.mxu0 0.0
  %599 = vmatprep.subr.mxu0 0.0
  %600 = vmatpush2.msra.mxu0 0.0
  %601 = vmatprep.subr.mxu0 0.0
  %602 = vmatpush2.msra.mxu0 0.0
  %603 = vmatprep.subr.mxu0 0.0
  %604 = vmatpush2.msra.mxu0 0.0
  %605 = vmatprep.subr.mxu0 0.0
  %606 = vmatpush2.msra.mxu0 0.0
  %607 = vmatprep.subr.mxu0 0.0
  %608 = vmatpush2.msra.mxu0 0.0
  %609 = vmatprep.subr.mxu0 0.0
  %610 = vmatpush2.msra.mxu0 0.0
  %611 = vmatprep.subr.mxu0 0.0
  %612 = vmatpush2.msra.mxu0 0.0
  %613 = vmatprep.subr.mxu0 0.0
  %614 = vmatpush2.msra.mxu0 0.0
  %615 = vmatprep.subr.mxu0 0.0
  %616 = vmatpush2.msra.mxu0 0.0
  %617 = vmatprep.subr.mxu0 0.0
  %618 = vmatpush2.msra.mxu0 0.0
  %619 = vmatprep.mubr.f32.mxu0 0.0
  %620 = vmatmul.mubr.f32.gmra.mxu0 %v553
  %v621 = vpop.f32.mrf.mxu0
  %v622 = vadd.f32 0.0, %v621
  %v623 = vpop.f32.mrf.mxu0
  %624 = vdwg.mxu0
  %v625 = vadd.f32 %v159, %v622
  %v626 = vmax.f32 %v625, 0.0
  %v628 = vsel %vm176, %v626, 0
  %630 = vmatprep.subr.mxu0 0.0
  %631 = vmatpush1.msra.mxu0 0.0
  %632 = vmatprep.subr.mxu0 0.0
  %633 = vmatpush1.msra.mxu0 0.0
  %634 = vmatprep.subr.mxu0 0.0
  %635 = vmatpush1.msra.mxu0 0.0
  %636 = vmatprep.subr.mxu0 0.0
  %637 = vmatpush1.msra.mxu0 0.0
  %638 = vmatprep.subr.mxu0 0.0
  %639 = vmatpush1.msra.mxu0 0.0
  %640 = vmatprep.subr.mxu0 0.0
  %641 = vmatpush1.msra.mxu0 0.0
  %642 = vmatprep.subr.mxu0 0.0
  %643 = vmatpush1.msra.mxu0 0.0
  %644 = vmatprep.subr.mxu0 0.0
  %645 = vmatpush1.msra.mxu0 0.0
  %646 = vmatprep.subr.mxu0 0.0
  %647 = vmatpush1.msra.mxu0 0.0
  %648 = vmatprep.subr.mxu0 0.0
  %649 = vmatpush1.msra.mxu0 0.0
  %650 = vmatprep.subr.mxu0 0.0
  %651 = vmatpush1.msra.mxu0 0.0
  %652 = vmatprep.subr.mxu0 0.0
  %653 = vmatpush1.msra.mxu0 0.0
  %654 = vmatprep.subr.mxu0 0.0
  %655 = vmatpush1.msra.mxu0 %v175
  %656 = vmatprep.subr.mxu0 0.0
  %657 = vmatpush1.msra.mxu0 %v174
  %658 = vmatprep.subr.mxu0 0.0
  %659 = vmatpush1.msra.mxu0 %v173
  %660 = vmatprep.subr.mxu0 0.0
  %661 = vmatpush1.msra.mxu0 %v172
  %662 = vmatprep.subr.mxu0 0.0
  %663 = vmatpush2.msra.mxu0 0.0
  %664 = vmatprep.subr.mxu0 0.0
  %665 = vmatpush2.msra.mxu0 0.0
  %666 = vmatprep.subr.mxu0 0.0
  %667 = vmatpush2.msra.mxu0 0.0
  %668 = vmatprep.subr.mxu0 0.0
  %669 = vmatpush2.msra.mxu0 0.0
  %670 = vmatprep.subr.mxu0 0.0
  %671 = vmatpush2.msra.mxu0 0.0
  %672 = vmatprep.subr.mxu0 0.0
  %673 = vmatpush2.msra.mxu0 0.0
  %674 = vmatprep.subr.mxu0 0.0
  %675 = vmatpush2.msra.mxu0 0.0
  %676 = vmatprep.subr.mxu0 0.0
  %677 = vmatpush2.msra.mxu0 0.0
  %678 = vmatprep.subr.mxu0 0.0
  %679 = vmatpush2.msra.mxu0 0.0
  %680 = vmatprep.subr.mxu0 0.0
  %681 = vmatpush2.msra.mxu0 0.0
  %682 = vmatprep.subr.mxu0 0.0
  %683 = vmatpush2.msra.mxu0 0.0
  %684 = vmatprep.subr.mxu0 0.0
  %685 = vmatpush2.msra.mxu0 0.0
  %686 = vmatprep.subr.mxu0 0.0
  %687 = vmatpush2.msra.mxu0 0.0
  %688 = vmatprep.subr.mxu0 0.0
  %689 = vmatpush2.msra.mxu0 0.0
  %690 = vmatprep.subr.mxu0 0.0
  %691 = vmatpush2.msra.mxu0 0.0
  %692 = vmatprep.subr.mxu0 0.0
  %693 = vmatpush2.msra.mxu0 0.0
  %694 = vmatprep.mubr.f32.mxu0 0.0
  %695 = vmatmul.mubr.f32.gmra.mxu0 %v628
  %v696 = vpop.f32.mrf.mxu0
  %v697 = vadd.f32 0.0, %v696
  %v698 = vpop.f32.mrf.mxu0
  %699 = vdwg.mxu0
  %v700 = vadd.f32 %v164, %v697
  %v701 = vmax.f32 %v700, 0.0
  %v703 = vsel %vm176, %v701, 0
  %705 = vmatprep.subr.mxu0 0.0
  %706 = vmatpush1.msra.mxu0 0.0
  %707 = vmatprep.subr.mxu0 0.0
  %708 = vmatpush1.msra.mxu0 0.0
  %709 = vmatprep.subr.mxu0 0.0
  %710 = vmatpush1.msra.mxu0 0.0
  %711 = vmatprep.subr.mxu0 0.0
  %712 = vmatpush1.msra.mxu0 0.0
  %713 = vmatprep.subr.mxu0 0.0
  %714 = vmatpush1.msra.mxu0 0.0
  %715 = vmatprep.subr.mxu0 0.0
  %716 = vmatpush1.msra.mxu0 0.0
  %717 = vmatprep.subr.mxu0 0.0
  %718 = vmatpush1.msra.mxu0 0.0
  %719 = vmatprep.subr.mxu0 0.0
  %720 = vmatpush1.msra.mxu0 0.0
  %721 = vmatprep.subr.mxu0 0.0
  %722 = vmatpush1.msra.mxu0 0.0
  %723 = vmatprep.subr.mxu0 0.0
  %724 = vmatpush1.msra.mxu0 0.0
  %725 = vmatprep.subr.mxu0 0.0
  %726 = vmatpush1.msra.mxu0 0.0
  %727 = vmatprep.subr.mxu0 0.0
  %728 = vmatpush1.msra.mxu0 0.0
  %729 = vmatprep.subr.mxu0 0.0
  %730 = vmatpush1.msra.mxu0 %v175
  %731 = vmatprep.subr.mxu0 0.0
  %732 = vmatpush1.msra.mxu0 %v174
  %733 = vmatprep.subr.mxu0 0.0
  %734 = vmatpush1.msra.mxu0 %v173
  %735 = vmatprep.subr.mxu0 0.0
  %736 = vmatpush1.msra.mxu0 %v172
  %737 = vmatprep.subr.mxu0 0.0
  %738 = vmatpush2.msra.mxu0 0.0
  %739 = vmatprep.subr.mxu0 0.0
  %740 = vmatpush2.msra.mxu0 0.0
  %741 = vmatprep.subr.mxu0 0.0
  %742 = vmatpush2.msra.mxu0 0.0
  %743 = vmatprep.subr.mxu0 0.0
  %744 = vmatpush2.msra.mxu0 0.0
  %745 = vmatprep.subr.mxu0 0.0
  %746 = vmatpush2.msra.mxu0 0.0
  %747 = vmatprep.subr.mxu0 0.0
  %748 = vmatpush2.msra.mxu0 0.0
  %749 = vmatprep.subr.mxu0 0.0
  %750 = vmatpush2.msra.mxu0 0.0
  %751 = vmatprep.subr.mxu0 0.0
  %752 = vmatpush2.msra.mxu0 0.0
  %753 = vmatprep.subr.mxu0 0.0
  %754 = vmatpush2.msra.mxu0 0.0
  %755 = vmatprep.subr.mxu0 0.0
  %756 = vmatpush2.msra.mxu0 0.0
  %757 = vmatprep.subr.mxu0 0.0
  %758 = vmatpush2.msra.mxu0 0.0
  %759 = vmatprep.subr.mxu0 0.0
  %760 = vmatpush2.msra.mxu0 0.0
  %761 = vmatprep.subr.mxu0 0.0
  %762 = vmatpush2.msra.mxu0 0.0
  %763 = vmatprep.subr.mxu0 0.0
  %764 = vmatpush2.msra.mxu0 0.0
  %765 = vmatprep.subr.mxu0 0.0
  %766 = vmatpush2.msra.mxu0 0.0
  %767 = vmatprep.subr.mxu0 0.0
  %768 = vmatpush2.msra.mxu0 0.0
  %769 = vmatprep.mubr.f32.mxu0 0.0
  %770 = vmatmul.mubr.f32.gmra.mxu0 %v703
  %v771 = vpop.f32.mrf.mxu0
  %v772 = vadd.f32 0.0, %v771
  %v773 = vpop.f32.mrf.mxu0
  %774 = vdwg.mxu0
  %v775 = vadd.f32 %v169, %v772
  %v776 = vmax.f32 %v775, 0.0
  %777 = vst.msk [vmem:[%s7] sm:$0xff] %vm176, %v251
  %778 = vst.msk [vmem:[%s7 + $0x8] sm:$0xff] %vm176, %v326
  %779 = vst.msk [vmem:[%s7 + $0x10] sm:$0xff] %vm176, %v401
  %780 = vst.msk [vmem:[%s7 + $0x18] sm:$0xff] %vm176, %v476
  %781 = vst.msk [vmem:[%s7 + $0x20] sm:$0xff] %vm176, %v551
  %782 = vst.msk [vmem:[%s7 + $0x28] sm:$0xff] %vm176, %v626
  %783 = vst.msk [vmem:[%s7 + $0x30] sm:$0xff] %vm176, %v701
  %784 = vst.msk [vmem:[%s7 + $0x38] sm:$0xff] %vm176, %v776
  %v785 = vld [vmem:[%s4] sm:$0xff]
  %v786 = vld [vmem:[%s4 + $0x8] sm:$0xff]
  %v787 = vld [vmem:[%s4 + $0x10] sm:$0xff]
  %v788 = vld [vmem:[%s4 + $0x18] sm:$0xff]
  %v789 = vld [vmem:[%s5] sm:$0x1]
  %v791 = vlaneseq
  %v792 = vshrl.u32 %v791, 7
  %v793 = vsub.s32 0, %v792
  %v794 = vrot.slane %v789, %v793
  %v797 = vsel %vm176, %v776, 0
  %799 = vmatprep.subr.mxu0 0.0
  %800 = vmatpush1.msra.mxu0 0.0
  %801 = vmatprep.subr.mxu0 0.0
  %802 = vmatpush1.msra.mxu0 0.0
  %803 = vmatprep.subr.mxu0 0.0
  %804 = vmatpush1.msra.mxu0 0.0
  %805 = vmatprep.subr.mxu0 0.0
  %806 = vmatpush1.msra.mxu0 0.0
  %807 = vmatprep.subr.mxu0 0.0
  %808 = vmatpush1.msra.mxu0 0.0
  %809 = vmatprep.subr.mxu0 0.0
  %810 = vmatpush1.msra.mxu0 0.0
  %811 = vmatprep.subr.mxu0 0.0
  %812 = vmatpush1.msra.mxu0 0.0
  %813 = vmatprep.subr.mxu0 0.0
  %814 = vmatpush1.msra.mxu0 0.0
  %815 = vmatprep.subr.mxu0 0.0
  %816 = vmatpush1.msra.mxu0 0.0
  %817 = vmatprep.subr.mxu0 0.0
  %818 = vmatpush1.msra.mxu0 0.0
  %819 = vmatprep.subr.mxu0 0.0
  %820 = vmatpush1.msra.mxu0 0.0
  %821 = vmatprep.subr.mxu0 0.0
  %822 = vmatpush1.msra.mxu0 0.0
  %823 = vmatprep.subr.mxu0 0.0
  %824 = vmatpush1.msra.mxu0 %v788
  %825 = vmatprep.subr.mxu0 0.0
  %826 = vmatpush1.msra.mxu0 %v787
  %827 = vmatprep.subr.mxu0 0.0
  %828 = vmatpush1.msra.mxu0 %v786
  %829 = vmatprep.subr.mxu0 0.0
  %830 = vmatpush1.msra.mxu0 %v785
  %831 = vmatprep.subr.mxu0 0.0
  %832 = vmatpush2.msra.mxu0 0.0
  %833 = vmatprep.subr.mxu0 0.0
  %834 = vmatpush2.msra.mxu0 0.0
  %835 = vmatprep.subr.mxu0 0.0
  %836 = vmatpush2.msra.mxu0 0.0
  %837 = vmatprep.subr.mxu0 0.0
  %838 = vmatpush2.msra.mxu0 0.0
  %839 = vmatprep.subr.mxu0 0.0
  %840 = vmatpush2.msra.mxu0 0.0
  %841 = vmatprep.subr.mxu0 0.0
  %842 = vmatpush2.msra.mxu0 0.0
  %843 = vmatprep.subr.mxu0 0.0
  %844 = vmatpush2.msra.mxu0 0.0
  %845 = vmatprep.subr.mxu0 0.0
  %846 = vmatpush2.msra.mxu0 0.0
  %847 = vmatprep.subr.mxu0 0.0
  %848 = vmatpush2.msra.mxu0 0.0
  %849 = vmatprep.subr.mxu0 0.0
  %850 = vmatpush2.msra.mxu0 0.0
  %851 = vmatprep.subr.mxu0 0.0
  %852 = vmatpush2.msra.mxu0 0.0
  %853 = vmatprep.subr.mxu0 0.0
  %854 = vmatpush2.msra.mxu0 0.0
  %855 = vmatprep.subr.mxu0 0.0
  %856 = vmatpush2.msra.mxu0 0.0
  %857 = vmatprep.subr.mxu0 0.0
  %858 = vmatpush2.msra.mxu0 0.0
  %859 = vmatprep.subr.mxu0 0.0
  %860 = vmatpush2.msra.mxu0 0.0
  %861 = vmatprep.subr.mxu0 0.0
  %862 = vmatpush2.msra.mxu0 0.0
  %863 = vmatprep.mubr.f32.mxu0 0.0
  %864 = vmatmul.mubr.f32.gmra.mxu0 %v253
  %v865 = vpop.f32.mrf.mxu0
  %v866 = vadd.f32 %v794, %v865
  %v867 = vpop.f32.mrf.mxu0
  %868 = vmatprep.mubr.f32.mxu0 0.0
  %869 = vmatmul.mubr.f32.gmra.mxu0 %v328
  %v870 = vpop.f32.mrf.mxu0
  %v871 = vadd.f32 %v794, %v870
  %v872 = vpop.f32.mrf.mxu0
  %873 = vmatprep.mubr.f32.mxu0 0.0
  %874 = vmatmul.mubr.f32.gmra.mxu0 %v403
  %v875 = vpop.f32.mrf.mxu0
  %v876 = vadd.f32 %v794, %v875
  %v877 = vpop.f32.mrf.mxu0
  %878 = vmatprep.mubr.f32.mxu0 0.0
  %879 = vmatmul.mubr.f32.gmra.mxu0 %v478
  %v880 = vpop.f32.mrf.mxu0
  %v881 = vadd.f32 %v794, %v880
  %v882 = vpop.f32.mrf.mxu0
  %883 = vmatprep.mubr.f32.mxu0 0.0
  %884 = vmatmul.mubr.f32.gmra.mxu0 %v553
  %v885 = vpop.f32.mrf.mxu0
  %v886 = vadd.f32 %v794, %v885
  %v887 = vpop.f32.mrf.mxu0
  %888 = vmatprep.mubr.f32.mxu0 0.0
  %889 = vmatmul.mubr.f32.gmra.mxu0 %v628
  %v890 = vpop.f32.mrf.mxu0
  %v891 = vadd.f32 %v794, %v890
  %v892 = vpop.f32.mrf.mxu0
  %893 = vmatprep.mubr.f32.mxu0 0.0
  %894 = vmatmul.mubr.f32.gmra.mxu0 %v703
  %v895 = vpop.f32.mrf.mxu0
  %v896 = vadd.f32 %v794, %v895
  %v897 = vpop.f32.mrf.mxu0
  %898 = vmatprep.mubr.f32.mxu0 0.0
  %899 = vmatmul.mubr.f32.gmra.mxu0 %v797
  %v900 = vpop.f32.mrf.mxu0
  %v901 = vadd.f32 %v794, %v900
  %v902 = vpop.f32.mrf.mxu0
  %903 = vdwg.mxu0
  %vm904 = vcmask 64512
  %905 = vst.msk [vmem:[%s6] sm:$0xff] %vm904, %v866
  %906 = vst.msk [vmem:[%s6 + $0x8] sm:$0xff] %vm904, %v871
  %907 = vst.msk [vmem:[%s6 + $0x10] sm:$0xff] %vm904, %v876
  %908 = vst.msk [vmem:[%s6 + $0x18] sm:$0xff] %vm904, %v881
  %909 = vst.msk [vmem:[%s6 + $0x20] sm:$0xff] %vm904, %v886
  %910 = vst.msk [vmem:[%s6 + $0x28] sm:$0xff] %vm904, %v891
  %911 = vst.msk [vmem:[%s6 + $0x30] sm:$0xff] %vm904, %v896
  %912 = vst.msk [vmem:[%s6 + $0x38] sm:$0xff] %vm904, %v901
  // Predicated region
  $region26: #{tpu_custom_call.1} parent=0 // pred_check
    _
  $region27: #{tpu_custom_call.1} parent=0 // pred_check_branch
    %914 = sbr.rel (0) target = $region29
  $region28: #{tpu_custom_call.1} parent=0 // pred_region
    _
  $region29: #{tpu_custom_call.1} parent=0 // pred_fallthru
    _
  // Predicated region
  $region30: #{tpu_custom_call.1} parent=0 // pred_check
    _
  $region31: #{tpu_custom_call.1} parent=0 // pred_check_branch
    %916 = sbr.rel (0) target = $region33
  $region32: #{tpu_custom_call.1} parent=0 // pred_region
    _
  $region33: #{tpu_custom_call.1} parent=0 // pred_fallthru
    _
  // Predicated region
  $region34: #{tpu_custom_call.1} parent=0 // pred_check
    _
  $region35: #{tpu_custom_call.1} parent=0 // pred_check_branch
    %918 = sbr.rel (0) target = $region37
  $region36: #{tpu_custom_call.1} parent=0 // pred_region
    _
  $region37: #{tpu_custom_call.1} parent=0 // pred_fallthru
    _
  // Predicated region
  $region38: #{tpu_custom_call.1} parent=0 // pred_check
    _
  $region39: #{tpu_custom_call.1} parent=0 // pred_check_branch
    %920 = sbr.rel (0) target = $region41
  $region40: #{tpu_custom_call.1} parent=0 // pred_region
    _
  $region41: #{tpu_custom_call.1} parent=0 // pred_fallthru
    _

</llo_original>
